<compile_context>
chip_gen: v5e
topology: v5e:2x2
jax: 0.10.0
libtpu: 0.0.40
codegen_flags: <defaults>
</compile_context>

<pallas_src>
import functools

import numpy as np
import jax
import jax.numpy as jnp
from jax.experimental import pallas as pl
from jax.experimental.pallas import tpu as pltpu


def _attn_kernel(x0_ref, x1_ref, bits_ref, o_ref, *, inv_scale, dropout_p):
    # x0_ref: (Bblk, Mp, D), x1_ref: (Bblk, N, D), bits_ref: (Bblk, Mp, N)
    q = x0_ref[...].astype(jnp.float32)          # (Bblk, Mp, D)
    k = x1_ref[...].astype(jnp.float32)          # (Bblk, N, D)

    # v0 = (x0 @ x1^T) * inv_scale_factor  -> batched MXU matmul over the D axis.
    s = jnp.einsum("bmd,bnd->bmn", q, k,
                   preferred_element_type=jnp.float32)       # (Bblk, Mp, N)
    s = s * jnp.float32(inv_scale)

    # v1 = softmax(v0, dim=-1)  (numerically stable; approx reciprocal -> EUP slot)
    s = s - jnp.max(s, axis=-1, keepdims=True)
    e = jnp.exp(s)
    p = e * pl.reciprocal(jnp.sum(e, axis=-1, keepdims=True), approx=True)

    # v2 = dropout(v1, p) — integer-domain keep test: P(bits < thr) = p.
    # The 1/(1-p) rescale is folded onto the (M,D) output after the second matmul.
    if dropout_p > 0.0:
        thr = jnp.uint32(min(int(round(dropout_p * 2.0**32)), 2**32 - 1))
        keep = bits_ref[...] >= thr
        p = jnp.where(keep, p, jnp.float32(0.0))

    # v3 = v2 @ x1  -> (Bblk, Mp, D) on the MXU.
    out = jnp.einsum("bmn,bnd->bmd", p, k,
                     preferred_element_type=jnp.float32)
    if dropout_p > 0.0:
        out = out * jnp.float32(1.0 / (1.0 - dropout_p))
    o_ref[...] = out.astype(o_ref.dtype)


def model_forward(x0, x1, *, inv_scale_factor, dropout_p=0.1, seed=0):
    """x0: (B, M, D) f32, x1: (B, N, D) f32 -> (B, M, D) f32."""
    B, M, D = x0.shape
    Bk, N, Dk = x1.shape
    assert B == Bk and D == Dk, "inconsistent shapes"

    # Pad M up to a sublane multiple so scores / stores are full-sublane tiles.
    Mp = ((M + 7) // 8) * 8
    x0p = x0 if Mp == M else jnp.pad(x0, ((0, 0), (0, Mp - M), (0, 0)))

    # Batch several batches per grid step (amortizes ~0.35us per-step overhead).
    Bblk = 1
    for cand in range(min(B, 8), 0, -1):
        if B % cand == 0:
            Bblk = cand
            break
    grid = (B // Bblk,)

    # Dropout randomness: uint32 bits drawn once in the wrapper (portable; no
    # per-step PRNG reseeding inside the kernel).
    bits = jax.random.bits(jax.random.PRNGKey(seed), (B, Mp, N), dtype=jnp.uint32)

    kernel = functools.partial(
        _attn_kernel,
        inv_scale=float(inv_scale_factor),
        dropout_p=float(dropout_p),
    )

    out = pl.pallas_call(
        kernel,
        out_shape=jax.ShapeDtypeStruct((B, Mp, D), x0.dtype),
        grid=grid,
        in_specs=[
            pl.BlockSpec((Bblk, Mp, D), lambda b: (b, 0, 0)),
            pl.BlockSpec((Bblk, N, D), lambda b: (b, 0, 0)),
            pl.BlockSpec((Bblk, Mp, N), lambda b: (b, 0, 0)),
        ],
        out_specs=pl.BlockSpec((Bblk, Mp, D), lambda b: (b, 0, 0)),
        compiler_params=pltpu.CompilerParams(
            dimension_semantics=("parallel",),   # batches independent -> megacore-shardable
            vmem_limit_bytes=32 * 1024 * 1024,   # stays within v7x's smaller VMEM budget
        ),
    )(x0p, x1, bits)

    return out[:, :M, :] if Mp != M else out


if __name__ == "__main__":
    # Shapes implied by the module (x1 fixed to the only consistent layout).
    B, M, N, D = 1, 10, 100, 128

    key = jax.random.PRNGKey(0)
    k0, k1 = jax.random.split(key)
    x0 = jax.random.normal(k0, (B, M, D), dtype=jnp.float32)
    x1 = jax.random.normal(k1, (B, N, D), dtype=jnp.float32)

    # Deterministic "parameter": inv_scale_factor ~ U(10, 20) with a fixed seed.
    inv_scale_factor = float(np.random.RandomState(0).uniform(10.0, 20.0))

    # ---- Correctness check against a pure-JAX reference (dropout disabled so
    # ---- the comparison is deterministic).
    out_nodrop = model_forward(x0, x1, inv_scale_factor=inv_scale_factor,
                               dropout_p=0.0)
    s_ref = jnp.einsum("bmd,bnd->bmn", x0, x1) * inv_scale_factor
    p_ref = jax.nn.softmax(s_ref, axis=-1)
    ref = jnp.einsum("bmn,bnd->bmd", p_ref, x1)
    np.testing.assert_allclose(np.asarray(out_nodrop), np.asarray(ref),
                               rtol=1e-4, atol=1e-4)

    # ---- Full forward pass with dropout p=0.1 (as in the module).
    out = model_forward(x0, x1, inv_scale_factor=inv_scale_factor,
                        dropout_p=0.1, seed=0)
    out = jax.block_until_ready(out)

    assert out.shape == (B, M, D)
    assert bool(jnp.all(jnp.isfinite(out)))

    print("KERNEL_OK")
</pallas_src>

<mosaic_0001>
module attributes {stable_mosaic.version = 11 : i64} {
  func.func @_attn_kernel(%arg0: i32, %arg1: memref<1x16x128xf32, #tpu.memory_space<vmem>>, %arg2: memref<1x100x128xf32, #tpu.memory_space<vmem>>, %arg3: memref<1x16x100xi32, #tpu.memory_space<vmem>>, %arg4: memref<1x16x128xf32, #tpu.memory_space<vmem>>) attributes {dimension_semantics = [#tpu.dimension_semantics<parallel>], iteration_bounds = array<i64: 1>, scalar_prefetch = 0 : i64, scratch_operands = 0 : i64, tpu.core_type = #tpu.core_type<tc>, window_params = [{transform_indices = @transform_0, window_bounds = array<i64: 1, 16, 128>}, {transform_indices = @transform_1, window_bounds = array<i64: 1, 100, 128>}, {transform_indices = @transform_2, window_bounds = array<i64: 1, 16, 100>}, {transform_indices = @transform_3, window_bounds = array<i64: 1, 16, 128>}]} {
    %c0 = arith.constant 0 : index
    %c0_0 = arith.constant 0 : index
    %c0_1 = arith.constant 0 : index
    %0 = vector.load %arg1[%c0, %c0_0, %c0_1] : memref<1x16x128xf32, #tpu.memory_space<vmem>>, vector<1x16x128xf32>
    %c0_2 = arith.constant 0 : index
    %c0_3 = arith.constant 0 : index
    %c0_4 = arith.constant 0 : index
    %1 = vector.load %arg2[%c0_2, %c0_3, %c0_4] : memref<1x100x128xf32, #tpu.memory_space<vmem>>, vector<1x100x128xf32>
    "tpu.trace_start"() <{level = 10 : i32, message = "bmd,bnd->bmn"}> : () -> ()
    %cst = arith.constant dense<0.000000e+00> : vector<1x16x100xf32>
    %2 = tpu.matmul %0, %1, %cst {dimension_numbers = #tpu.dot_dimension_numbers<[2], [2], [1], [1], [0, 0, 0, 1, 1, 1], [0], [0]>} : vector<1x16x128xf32>, vector<1x100x128xf32>, vector<1x16x100xf32> -> vector<1x16x100xf32>
    "tpu.trace_stop"() : () -> ()
    %cst_5 = arith.constant 15.4881353 : f32
    %3 = vector.broadcast %cst_5 : f32 to vector<1x16x100xf32>
    %4 = arith.mulf %2, %3 : vector<1x16x100xf32>
    %cst_6 = arith.constant dense<0xFF800000> : vector<1x16xf32>
    %5 = vector.multi_reduction <maximumf>, %4, %cst_6 [2] : vector<1x16x100xf32> to vector<1x16xf32>
    %6 = vector.shape_cast %5 : vector<1x16xf32> to vector<1x16x1xf32>
    %7 = vector.broadcast %6 : vector<1x16x1xf32> to vector<1x16x100xf32>
    %8 = arith.subf %4, %7 : vector<1x16x100xf32>
    %9 = math.exp %8 : vector<1x16x100xf32>
    %cst_7 = arith.constant dense<0.000000e+00> : vector<1x16xf32>
    %10 = vector.multi_reduction <add>, %9, %cst_7 [2] : vector<1x16x100xf32> to vector<1x16xf32>
    %11 = vector.shape_cast %10 : vector<1x16xf32> to vector<1x16x1xf32>
    %12 = tpu.reciprocal %11 {approx = true} : vector<1x16x1xf32> -> vector<1x16x1xf32>
    %13 = vector.broadcast %12 : vector<1x16x1xf32> to vector<1x16x100xf32>
    %14 = arith.mulf %9, %13 : vector<1x16x100xf32>
    "tpu.trace_start"() <{level = 10 : i32, message = "bmn,bnd->bmd"}> : () -> ()
    %cst_8 = arith.constant dense<0.000000e+00> : vector<1x16x128xf32>
    %15 = tpu.matmul %14, %1, %cst_8 {dimension_numbers = #tpu.dot_dimension_numbers<[2], [1], [1], [2], [0, 0, 0, 1, 1, 2], [0], [0]>} : vector<1x16x100xf32>, vector<1x100x128xf32>, vector<1x16x128xf32> -> vector<1x16x128xf32>
    "tpu.trace_stop"() : () -> ()
    %c0_9 = arith.constant 0 : index
    %c0_10 = arith.constant 0 : index
    %c0_11 = arith.constant 0 : index
    %16 = vector.load %arg4[%c0_9, %c0_10, %c0_11] : memref<1x16x128xf32, #tpu.memory_space<vmem>>, vector<1x16x128xf32>
    tpu.vector_store %arg4[%c0_9, %c0_10, %c0_11], %15 {strides = array<i32>} : memref<1x16x128xf32, #tpu.memory_space<vmem>>, vector<1x16x128xf32>,
    return
  }
  func.func @transform_0(%arg0: i32) -> (i32, i32, i32) {
    %c0_i32 = arith.constant 0 : i32
    %c0_i32_0 = arith.constant 0 : i32
    %c0_i32_1 = arith.constant 0 : i32
    return %arg0, %c0_i32, %c0_i32_0 : i32, i32, i32
  }
  func.func @transform_1(%arg0: i32) -> (i32, i32, i32) {
    %c0_i32 = arith.constant 0 : i32
    %c0_i32_0 = arith.constant 0 : i32
    %c0_i32_1 = arith.constant 0 : i32
    return %arg0, %c0_i32, %c0_i32_0 : i32, i32, i32
  }
  func.func @transform_2(%arg0: i32) -> (i32, i32, i32) {
    %c0_i32 = arith.constant 0 : i32
    %c0_i32_0 = arith.constant 0 : i32
    %c0_i32_1 = arith.constant 0 : i32
    return %arg0, %c0_i32, %c0_i32_0 : i32, i32, i32
  }
  func.func @transform_3(%arg0: i32) -> (i32, i32, i32) {
    %c0_i32 = arith.constant 0 : i32
    %c0_i32_0 = arith.constant 0 : i32
    %c0_i32_1 = arith.constant 0 : i32
    return %arg0, %c0_i32, %c0_i32_0 : i32, i32, i32
  }
}

</mosaic_0001>

<llo_original>
// kernel: tpu_custom_call.1
$region0: #{tpu_custom_call.1}
  #allocation0 [shape = 'u32[]', space=smem, size = 0x4, offset = 0x4, fixed_abs, tag = 'smem constant byte address 0x4 - core index']
  #allocation1 [shape = 'u32[72,128]{1,0:T(1,128)}', space=vmem, size = 0x9000, scoped, tag = 'internal scratch']
  %s0 = inlined_call_operand.vmem [shape: f32[1,16,128], index: 0, kind: input, shape index: {}]
  %s1 = inlined_call_operand.vmem [shape: f32[1,100,128], index: 1, kind: input, shape index: {}]
  %s2 = inlined_call_operand.vmem [shape: u32[1,16,100], index: 2, kind: input, shape index: {}]
  %s3 = inlined_call_operand.hbm [shape: f32[1,16,128], index: 3, kind: output, shape index: {}]
  %s4 = sld [smem:[#allocation0]]
  $region22: #{tpu_custom_call.1} parent=0
    _
  %s6 = ssub.s32 1, %s4
  %s7 = scalar_select 0, %s6, %s4
  $region1: #{tpu_custom_call.1} parent=0
    #allocation2 [shape = 'u8[8192]{0}', space=vmem, size = 0x2000, scoped, tag = 'output window, operand 0, single buffered']
    #allocation3 [shape = 's32[1]{0}', space=sflag, size = 0x4, scoped, tag = 'scoped memory for tpu_custom_call.1']
    %8 = vsyncpa [#allocation3], 0
    // Predicated region
    $region2: #{tpu_custom_call.1} parent=1 // pred_check
      _
    $region3: #{tpu_custom_call.1} parent=1 // pred_check_branch
      %10 = sbr.rel (0) target = $region5
    $region4: #{tpu_custom_call.1} parent=1 // pred_region
      _
    $region5: #{tpu_custom_call.1} parent=1 // pred_fallthru
      _
    // Predicated region
    $region6: #{tpu_custom_call.1} parent=1 // pred_check
      _
    $region7: #{tpu_custom_call.1} parent=1 // pred_check_branch
      %12 = sbr.rel (0) target = $region9
    $region8: #{tpu_custom_call.1} parent=1 // pred_region
      _
    $region9: #{tpu_custom_call.1} parent=1 // pred_fallthru
      _
    // Predicated region
    $region10: #{tpu_custom_call.1} parent=1 // pred_check
      _
    $region11: #{tpu_custom_call.1} parent=1 // pred_check_branch
      %14 = sbr.rel (0) target = $region13
    $region12: #{tpu_custom_call.1} parent=1 // pred_region
      _
    $region13: #{tpu_custom_call.1} parent=1 // pred_fallthru
      _
    %v15 = vld [vmem:[%s0] sm:$0xff]
    %v16 = vld [vmem:[%s0 + $0x8] sm:$0xff]
    %v17 = vld [vmem:[%s1] sm:$0xff]
    %v18 = vld [vmem:[%s1 + $0x8] sm:$0xff]
    %v19 = vld [vmem:[%s1 + $0x10] sm:$0xff]
    %v20 = vld [vmem:[%s1 + $0x18] sm:$0xff]
    %v21 = vld [vmem:[%s1 + $0x20] sm:$0xff]
    %v22 = vld [vmem:[%s1 + $0x28] sm:$0xff]
    %v23 = vld [vmem:[%s1 + $0x30] sm:$0xff]
    %v24 = vld [vmem:[%s1 + $0x38] sm:$0xff]
    %v25 = vld [vmem:[%s1 + $0x40] sm:$0xff]
    %v26 = vld [vmem:[%s1 + $0x48] sm:$0xff]
    %v27 = vld [vmem:[%s1 + $0x50] sm:$0xff]
    %v28 = vld [vmem:[%s1 + $0x58] sm:$0xff]
    %v29 = vld [vmem:[%s1 + $0x60] sm:$0xf]
    %30 = vmatpush.xpose.msra.mxu0 0.0
    %31 = vmatpush.xpose.msra.mxu0 0.0
    %32 = vmatpush.xpose.msra.mxu0 0.0
    %33 = vmatpush.xpose.msra.mxu0 %v29
    %34 = vmatpush.xpose.msra.mxu0 %v28
    %35 = vmatpush.xpose.msra.mxu0 %v27
    %36 = vmatpush.xpose.msra.mxu0 %v26
    %37 = vmatpush.xpose.msra.mxu0 %v25
    %38 = vmatpush.xpose.msra.mxu0 %v24
    %39 = vmatpush.xpose.msra.mxu0 %v23
    %40 = vmatpush.xpose.msra.mxu0 %v22
    %41 = vmatpush.xpose.msra.mxu0 %v21
    %42 = vmatpush.xpose.msra.mxu0 %v20
    %43 = vmatpush.xpose.msra.mxu0 %v19
    %44 = vmatpush.xpose.msra.mxu0 %v18
    %45 = vmatpush.xpose.msra.mxu0 %v17
    %46 = vmatmul.f32.gmra.mxu0 %v15
    %v47 = vpop.f32.mrf.mxu0
    %v48 = vadd.f32 0.0, %v47
    %49 = vmatmul.f32.gmra.mxu0 %v16
    %v50 = vpop.f32.mrf.mxu0
    %v51 = vadd.f32 0.0, %v50
    %52 = vdwg.mxu0
    %v53 = vmul.f32 %v48, 15.488135
    %v54 = vmul.f32 %v51, 15.488135
    %vm55 = vcmask 818176
    %v56 = vsel %vm55, %v53, -inf
    %57 = vmax.xlane.f32.xlu0 %v56
    %v58 = vpop.xlane.xlu0 %57
    %v59 = vsel %vm55, %v54, -inf
    %60 = vmax.xlane.f32.xlu0 %v59
    %v61 = vpop.xlane.xlu0 %60
    %v62 = vsub.f32 %v53, %v58
    %v63 = vsub.f32 %v54, %v61
    %v64 = vmul.f32 %v62, 1.442695
    %v65 = vpow.pop %v64
    %v66 = vmul.f32 %v63, 1.442695
    %v67 = vpow.pop %v66
    %v68 = vsel %vm55, %v65, 0.0
    %69 = vadd.xlane.f32.xlu0 %v68
    %v70 = vpop.xlane.xlu0 %69
    %v71 = vsel %vm55, %v67, 0.0
    %72 = vadd.xlane.f32.xlu0 %v71
    %v73 = vpop.xlane.xlu0 %72
    %v74 = vrcp.pop %v70
    %v75 = vrcp.pop %v73
    %v76 = vmul.f32 %v65, %v74
    %v77 = vmul.f32 %v67, %v75
    %v79 = vsel %vm55, %v76, 0
    %v82 = vsel %vm55, %v77, 0
    %vm84 = vcmask 1043456
    %v86 = vsel %vm84, %v29, 0
    %88 = vmatpush.msra.mxu0 0.0
    %89 = vmatpush.msra.mxu0 0.0
    %90 = vmatpush.msra.mxu0 0.0
    %91 = vmatpush.msra.mxu0 %v86
    %92 = vmatpush.msra.mxu0 %v28
    %93 = vmatpush.msra.mxu0 %v27
    %94 = vmatpush.msra.mxu0 %v26
    %95 = vmatpush.msra.mxu0 %v25
    %96 = vmatpush.msra.mxu0 %v24
    %97 = vmatpush.msra.mxu0 %v23
    %98 = vmatpush.msra.mxu0 %v22
    %99 = vmatpush.msra.mxu0 %v21
    %100 = vmatpush.msra.mxu0 %v20
    %101 = vmatpush.msra.mxu0 %v19
    %102 = vmatpush.msra.mxu0 %v18
    %103 = vmatpush.msra.mxu0 %v17
    %104 = vmatmul.f32.gmra.mxu0 %v79
    %v105 = vpop.f32.mrf.mxu0
    %v106 = vadd.f32 0.0, %v105
    %107 = vmatmul.f32.gmra.mxu0 %v82
    %v108 = vpop.f32.mrf.mxu0
    %v109 = vadd.f32 0.0, %v108
    %110 = vdwg.mxu0
    %111 = vst [vmem:[#allocation2] sm:$0xff] %v106
    %112 = vst [vmem:[#allocation2 + $0x8] sm:$0xff] %v109
    // Predicated region
    $region14: #{tpu_custom_call.1} parent=1 // pred_check
      _
    $region15: #{tpu_custom_call.1} parent=1 // pred_check_branch
      %114 = sbr.rel (0) target = $region17
    $region16: #{tpu_custom_call.1} parent=1 // pred_region
      %116 = vsyncadd [#allocation3], 0
      %s117 = sshll.u32 [#allocation2], 4
      %s118 = int_to_ptr.vmem [resolvable:$true] %s117
      %s119 = sshll.u32 %s3, 4
      %s120 = int_to_ptr.hbm [resolvable:$true] %s119
      %125 = dma.vmem_to_hbm [thread:$0]  %s118, 256, %s120, [#allocation3], 128, 128, 8
    $region17: #{tpu_custom_call.1} parent=1 // pred_fallthru
      _
    // Predicated region
    $region18: #{tpu_custom_call.1} parent=1 // pred_check
      _
    $region19: #{tpu_custom_call.1} parent=1 // pred_check_branch
      %127 = sbr.rel (0) target = $region21
    $region20: #{tpu_custom_call.1} parent=1 // pred_region
      %129 = dma.done [#allocation3], 256
    $region21: #{tpu_custom_call.1} parent=1 // pred_fallthru
      _
    %130 = vsyncpa [#allocation3], 1

</llo_original>
